<compile_context>
chip_gen: v7x
topology: tpu7x:2x2x1
jax: 0.10.0
libtpu: 0.0.40
codegen_flags: <defaults>
</compile_context>

<pallas_src>
import functools
import math

import jax
import jax.numpy as jnp
from jax.experimental import pallas as pl
from jax.experimental.pallas import tpu as pltpu

SMOOTH = 0.0001

# VMEM budget (bytes) for one logits block; Pallas double-buffers it.
_LOGIT_BLOCK_BUDGET = 2 * 1024 * 1024


def _focal_tile_loss(logit_ref, target_ref, alpha_ref, *, gamma, b_total,
                     s_total, ignore_index, tile_b, tile_s):
    """Masked per-element focal loss for one (TB, C, TS) tile -> (TB, 1, TS)."""
    x = logit_ref[...].astype(jnp.float32)                   # (TB, C, TS)
    x = x - jnp.max(x, axis=1, keepdims=True)
    ex = jnp.exp(x)

    tgt = target_ref[...]                                     # (TB, 1, TS) int32
    cls = jax.lax.broadcasted_iota(jnp.int32, ex.shape, 1)    # class id on sublanes
    onehot = (cls == tgt).astype(jnp.float32)                 # (TB, C, TS)

    # Only the target-class probability is needed: p_t = exp(x_t)/sum_c exp(x_c)
    # (skips the full softmax division over C).
    denom = jnp.sum(ex, axis=1, keepdims=True)                # (TB, 1, TS)
    num = jnp.sum(ex * onehot, axis=1, keepdims=True)         # (TB, 1, TS)
    p_t = num / denom + SMOOTH

    alpha_c = jnp.sum(alpha_ref[...] * onehot, axis=1, keepdims=True)

    logpt = jnp.log(p_t)
    one_minus = 1.0 - p_t
    if gamma == 2:
        mod = one_minus * one_minus
    elif gamma == 1:
        mod = one_minus
    else:
        base = one_minus
        if float(gamma) != float(int(gamma)):
            # p_t can exceed 1 by SMOOTH; clamp so non-integer powers don't NaN.
            base = jnp.maximum(base, 0.0)
        mod = base ** gamma
    loss = (-alpha_c) * mod * logpt                            # (TB, 1, TS)

    # Validity: in-bounds rows/cols of the (possibly ragged) tile + ignore_index.
    rows = (pl.program_id(0) * tile_b
            + jax.lax.broadcasted_iota(jnp.int32, loss.shape, 0))
    cols = (pl.program_id(1) * tile_s
            + jax.lax.broadcasted_iota(jnp.int32, loss.shape, 2))
    valid = (rows < b_total) & (cols < s_total)
    if ignore_index is not None:
        valid = valid & (tgt != ignore_index)
    # jnp.where (not multiply) so garbage/NaN in out-of-bounds lanes can't leak.
    return jnp.where(valid, loss, 0.0)


def _focal_sum_kernel(logit_ref, target_ref, alpha_ref, psum_ref, **kw):
    loss = _focal_tile_loss(logit_ref, target_ref, alpha_ref, **kw)
    # One partial sum per grid program, broadcast over a full 128-lane vector
    # (single unmasked store).  The wrapper reads lane 0 of each block.
    psum_ref[...] = jnp.full((1, 1, 1, 128), jnp.sum(loss), jnp.float32)


def _focal_elem_kernel(logit_ref, target_ref, alpha_ref, loss_ref, **kw):
    loss_ref[...] = _focal_tile_loss(logit_ref, target_ref, alpha_ref, **kw)


def _round_up(x, m):
    return (x + m - 1) // m * m


def focal_loss_ori(logit, target, *, num_class, alpha=None, gamma=2,
                   ignore_index=None, reduction='mean',
                   validate_targets=False):
    """Pallas implementation of FocalLoss_Ori.forward (forward pass only)."""
    N, C = logit.shape[:2]
    if C != num_class:
        raise ValueError('logit channel dim does not match num_class')

    if alpha is None:
        alpha_vec = jnp.ones((num_class,), jnp.float32)
    elif isinstance(alpha, (int, float)):
        alpha_vec = jnp.full((num_class,), float(alpha), jnp.float32)
    else:
        alpha_vec = jnp.asarray(alpha, jnp.float32)
        if alpha_vec.shape[0] != num_class:
            raise RuntimeError('the length not equal to number of class')
    alpha3 = alpha_vec.reshape(1, num_class, 1)

    ori_shp = target.shape
    if logit.ndim > 2:
        B = N
        S = math.prod(logit.shape[2:])
        x3 = logit.reshape(B, C, S)                    # free (contiguous) reshape
        t3 = target.reshape(B, 1, S).astype(jnp.int32)
    else:
        # Plain (N, C) classification: put the batch on lanes (one transpose).
        B, S = 1, N
        x3 = jnp.swapaxes(logit, 0, 1)[None]           # (1, C, N)
        t3 = target.reshape(1, 1, N).astype(jnp.int32)
    M = B * S

    if x3.dtype not in (jnp.float32, jnp.bfloat16, jnp.float16):
        x3 = x3.astype(jnp.float32)
    itemsize = x3.dtype.itemsize

    if validate_targets:
        # TODO(synk): data-dependent ValueError needs a host sync and breaks
        # jit, so the torch range check is opt-in only.
        t_min = int(jnp.min(t3))
        t_max = int(jnp.max(t3))
        if t_max >= num_class or t_min < 0:
            raise ValueError(
                f'Target values must be between 0 and {num_class - 1}')

    # ---- tile sizing: largest lane-dense block within the VMEM budget -------
    TB = B if B <= 8 else 8
    ts_cap = max(128,
                 (_LOGIT_BLOCK_BUDGET // max(1, TB * C * itemsize)) // 128 * 128)
    TS = min(_round_up(S, 128), ts_cap)
    if B > 8:
        tb_cap = max(8,
                     (_LOGIT_BLOCK_BUDGET // max(1, C * TS * itemsize)) // 8 * 8)
        TB = min(_round_up(B, 8), tb_cap)
    grid = (pl.cdiv(B, TB), pl.cdiv(S, TS))

    in_specs = [
        pl.BlockSpec((TB, C, TS), lambda i, j: (i, 0, j)),   # logits (orig dtype)
        pl.BlockSpec((TB, 1, TS), lambda i, j: (i, 0, j)),   # targets
        pl.BlockSpec((1, C, 1), lambda i, j: (0, 0, 0)),     # alpha (resident)
    ]
    compiler_params = pltpu.CompilerParams(
        dimension_semantics=("parallel", "parallel"),
        vmem_limit_bytes=32 * 1024 * 1024)

    kern_kw = dict(gamma=gamma, b_total=B, s_total=S,
                   ignore_index=ignore_index, tile_b=TB, tile_s=TS)

    out_bytes = grid[0] * grid[1] * 128 * 4 if reduction == 'mean' else M * 4
    cost = pl.CostEstimate(
        flops=int(12 * M * C),
        transcendentals=int(M * C + M),
        bytes_accessed=int(M * C * itemsize + M * 4 + out_bytes))

    if reduction == 'mean':
        psum = pl.pallas_call(
            functools.partial(_focal_sum_kernel, **kern_kw),
            out_shape=jax.ShapeDtypeStruct((grid[0], grid[1], 1, 128),
                                           jnp.float32),
            grid=grid,
            in_specs=in_specs,
            out_specs=pl.BlockSpec((1, 1, 1, 128), lambda i, j: (i, j, 0, 0)),
            compiler_params=compiler_params,
            cost_estimate=cost,
        )(x3, t3, alpha3)
        total = jnp.sum(psum[:, :, 0, 0])
        loss = total / jnp.float32(M)
        if ignore_index is not None:
            # Faithful to the torch code's mean-then-divide quirk:
            #   loss = loss.mean(); loss = loss.sum() / valid_mask.sum()
            valid_count = jnp.sum((t3 != ignore_index).astype(jnp.float32))
            loss = loss / valid_count
        return loss

    loss_per = pl.pallas_call(
        functools.partial(_focal_elem_kernel, **kern_kw),
        out_shape=jax.ShapeDtypeStruct((B, 1, S), jnp.float32),
        grid=grid,
        in_specs=in_specs,
        out_specs=pl.BlockSpec((TB, 1, TS), lambda i, j: (i, 0, j)),
        compiler_params=compiler_params,
        cost_estimate=cost,
    )(x3, t3, alpha3)

    if reduction == 'none':
        return loss_per.reshape(ori_shp)
    # Any other reduction string: torch falls through without reducing.
    return loss_per.reshape(-1)


def _reference_focal_loss(logit, target, num_class, alpha=None, gamma=2,
                          ignore_index=None, reduction='mean'):
    """Pure-JAX mirror of the PyTorch FocalLoss_Ori.forward."""
    prob = jax.nn.softmax(logit, axis=1)
    if logit.ndim > 2:
        prob = jnp.moveaxis(prob, 1, -1).reshape(-1, num_class)
    t = target.reshape(-1)
    valid = None
    if ignore_index is not None:
        valid = (t != ignore_index)
        t = t * valid
    p_t = prob[jnp.arange(t.shape[0]), t] + SMOOTH
    if alpha is None:
        alpha_vec = jnp.ones((num_class,), jnp.float32)
    else:
        alpha_vec = jnp.asarray(alpha, jnp.float32)
    loss = -alpha_vec[t] * (1.0 - p_t) ** gamma * jnp.log(p_t)
    if valid is not None:
        loss = loss * valid
    if reduction == 'mean':
        loss = loss.mean()
        if valid is not None:
            loss = loss / jnp.sum(valid)
        return loss
    if reduction == 'none':
        return loss.reshape(target.shape)
    return loss


if __name__ == "__main__":
    key = jax.random.PRNGKey(0)
    k1, k2 = jax.random.split(key)

    N, C, H, W = 2, 4, 16, 16
    logit = jax.random.normal(k1, (N, C, H, W), dtype=jnp.float32)
    target = jax.random.randint(k2, (N, H, W), 0, C, dtype=jnp.int32)

    # mean reduction (sum-only pallas_call variant)
    out = focal_loss_ori(logit, target, num_class=C, gamma=2, reduction='mean')
    out = jax.block_until_ready(out)
    ref = _reference_focal_loss(logit, target, C, gamma=2, reduction='mean')
    assert jnp.allclose(out, ref, rtol=1e-5, atol=1e-6), (out, ref)

    # none reduction (lane-dense per-element output)
    out_none = focal_loss_ori(logit, target, num_class=C, gamma=2,
                              reduction='none')
    out_none = jax.block_until_ready(out_none)
    ref_none = _reference_focal_loss(logit, target, C, gamma=2,
                                     reduction='none')
    assert out_none.shape == target.shape
    assert jnp.allclose(out_none, ref_none, rtol=1e-5, atol=1e-6)

    # ignore_index + mean (exercises the in-kernel ignore mask)
    out_ig = focal_loss_ori(logit, target, num_class=C, gamma=2,
                            ignore_index=1, reduction='mean')
    out_ig = jax.block_until_ready(out_ig)
    ref_ig = _reference_focal_loss(logit, target, C, gamma=2,
                                   ignore_index=1, reduction='mean')
    assert jnp.allclose(out_ig, ref_ig, rtol=1e-5, atol=1e-6), (out_ig, ref_ig)

    # wrapper is jittable (no host syncs / eager checks by default)
    jit_mean = jax.jit(lambda l, t: focal_loss_ori(l, t, num_class=C,
                                                   gamma=2, reduction='mean'))
    out_jit = jax.block_until_ready(jit_mean(logit, target))
    assert jnp.allclose(out_jit, ref, rtol=1e-5, atol=1e-6)

    print("KERNEL_OK")
</pallas_src>

<mosaic_0001>
module attributes {stable_mosaic.version = 11 : i64} {
  func.func @_focal_sum_kernel(%arg0: i32, %arg1: i32, %arg2: memref<2x4x256xf32, #tpu.memory_space<vmem>>, %arg3: memref<2x1x256xi32, #tpu.memory_space<vmem>>, %arg4: memref<1x4x1xf32, #tpu.memory_space<vmem>>, %arg5: memref<1x1x1x128xf32, #tpu.memory_space<vmem>>) attributes {dimension_semantics = [#tpu.dimension_semantics<parallel>, #tpu.dimension_semantics<parallel>], iteration_bounds = array<i64: 1, 1>, scalar_prefetch = 0 : i64, scratch_operands = 0 : i64, tpu.core_type = #tpu.core_type<tc>, window_params = [{transform_indices = @transform_0, window_bounds = array<i64: 2, 4, 256>}, {transform_indices = @transform_1, window_bounds = array<i64: 2, 1, 256>}, {pipeline_mode = #tpu.pipeline_mode<synchronous>, transform_indices = @transform_2, window_bounds = array<i64: 1, 4, 1>}, {transform_indices = @transform_3, window_bounds = array<i64: 1, 1, 1, 128>}]} {
    %c0 = arith.constant 0 : index
    %c0_0 = arith.constant 0 : index
    %c0_1 = arith.constant 0 : index
    %0 = vector.load %arg2[%c0, %c0_0, %c0_1] : memref<2x4x256xf32, #tpu.memory_space<vmem>>, vector<2x4x256xf32>
    %cst = arith.constant dense<0xFF800000> : vector<2x256xf32>
    %1 = vector.multi_reduction <maximumf>, %0, %cst [1] : vector<2x4x256xf32> to vector<2x256xf32>
    %2 = vector.shape_cast %1 : vector<2x256xf32> to vector<2x1x256xf32>
    %3 = vector.broadcast %2 : vector<2x1x256xf32> to vector<2x4x256xf32>
    %4 = arith.subf %0, %3 : vector<2x4x256xf32>
    %5 = math.exp %4 : vector<2x4x256xf32>
    %c0_2 = arith.constant 0 : index
    %c0_3 = arith.constant 0 : index
    %c0_4 = arith.constant 0 : index
    %6 = vector.load %arg3[%c0_2, %c0_3, %c0_4] : memref<2x1x256xi32, #tpu.memory_space<vmem>>, vector<2x1x256xi32>
    %7 = tpu.iota {dimensions = array<i32: 1>} : vector<2x4x256xi32>
    %8 = vector.broadcast %6 : vector<2x1x256xi32> to vector<2x4x256xi32>
    %9 = arith.cmpi eq, %7, %8 : vector<2x4x256xi32>
    %10 = arith.extui %9 : vector<2x4x256xi1> to vector<2x4x256xi32>
    %11 = arith.sitofp %10 : vector<2x4x256xi32> to vector<2x4x256xf32>
    %cst_5 = arith.constant dense<0.000000e+00> : vector<2x256xf32>
    %12 = vector.multi_reduction <add>, %5, %cst_5 [1] : vector<2x4x256xf32> to vector<2x256xf32>
    %13 = vector.shape_cast %12 : vector<2x256xf32> to vector<2x1x256xf32>
    %14 = arith.mulf %5, %11 : vector<2x4x256xf32>
    %cst_6 = arith.constant dense<0.000000e+00> : vector<2x256xf32>
    %15 = vector.multi_reduction <add>, %14, %cst_6 [1] : vector<2x4x256xf32> to vector<2x256xf32>
    %16 = vector.shape_cast %15 : vector<2x256xf32> to vector<2x1x256xf32>
    %17 = arith.divf %16, %13 : vector<2x1x256xf32>
    %cst_7 = arith.constant 9.99999974E-5 : f32
    %18 = vector.broadcast %cst_7 : f32 to vector<2x1x256xf32>
    %19 = arith.addf %17, %18 : vector<2x1x256xf32>
    %c0_8 = arith.constant 0 : index
    %c0_9 = arith.constant 0 : index
    %c0_10 = arith.constant 0 : index
    %20 = vector.load %arg4[%c0_8, %c0_9, %c0_10] : memref<1x4x1xf32, #tpu.memory_space<vmem>>, vector<1x4x1xf32>
    %21 = vector.broadcast %20 : vector<1x4x1xf32> to vector<2x4x256xf32>
    %22 = arith.mulf %21, %11 : vector<2x4x256xf32>
    %cst_11 = arith.constant dense<0.000000e+00> : vector<2x256xf32>
    %23 = vector.multi_reduction <add>, %22, %cst_11 [1] : vector<2x4x256xf32> to vector<2x256xf32>
    %24 = vector.shape_cast %23 : vector<2x256xf32> to vector<2x1x256xf32>
    %25 = math.log %19 : vector<2x1x256xf32>
    %cst_12 = arith.constant 1.000000e+00 : f32
    %26 = vector.broadcast %cst_12 : f32 to vector<2x1x256xf32>
    %27 = arith.subf %26, %19 : vector<2x1x256xf32>
    %28 = arith.mulf %27, %27 : vector<2x1x256xf32>
    %cst_13 = arith.constant 0.000000e+00 : f32
    %29 = vector.broadcast %cst_13 : f32 to vector<2x1x256xf32>
    %30 = arith.subf %29, %24 : vector<2x1x256xf32>
    %31 = arith.mulf %30, %28 : vector<2x1x256xf32>
    %32 = arith.mulf %31, %25 : vector<2x1x256xf32>
    %c2_i32 = arith.constant 2 : i32
    %33 = arith.muli %arg0, %c2_i32 : i32
    %34 = tpu.iota {dimensions = array<i32: 0>} : vector<2x1x256xi32>
    %35 = vector.broadcast %33 : i32 to vector<2x1x256xi32>
    %36 = arith.addi %35, %34 : vector<2x1x256xi32>
    %c256_i32 = arith.constant 256 : i32
    %37 = arith.muli %arg1, %c256_i32 : i32
    %38 = tpu.iota {dimensions = array<i32: 2>} : vector<2x1x256xi32>
    %39 = vector.broadcast %37 : i32 to vector<2x1x256xi32>
    %40 = arith.addi %39, %38 : vector<2x1x256xi32>
    %c2_i32_14 = arith.constant 2 : i32
    %41 = vector.broadcast %c2_i32_14 : i32 to vector<2x1x256xi32>
    %42 = arith.cmpi slt, %36, %41 : vector<2x1x256xi32>
    %c256_i32_15 = arith.constant 256 : i32
    %43 = vector.broadcast %c256_i32_15 : i32 to vector<2x1x256xi32>
    %44 = arith.cmpi slt, %40, %43 : vector<2x1x256xi32>
    %45 = arith.andi %42, %44 : vector<2x1x256xi1>
    %cst_16 = arith.constant 0.000000e+00 : f32
    %46 = vector.broadcast %cst_16 : f32 to vector<2x1x256xf32>
    %47 = arith.select %45, %32, %46 : vector<2x1x256xi1>, vector<2x1x256xf32>
    %48 = vector.shape_cast %47 : vector<2x1x256xf32> to vector<1x2x1x256xf32>
    %cst_17 = arith.constant dense<0.000000e+00> : vector<1xf32>
    %49 = vector.multi_reduction <add>, %48, %cst_17 [1, 2, 3] : vector<1x2x1x256xf32> to vector<1xf32>
    %50 = vector.shape_cast %49 : vector<1xf32> to vector<1x1x1x1xf32>
    %51 = vector.extract %50[0, 0, 0, 0] : f32 from vector<1x1x1x1xf32>
    %52 = vector.broadcast %51 : f32 to vector<1x1x1x128xf32>
    %c0_18 = arith.constant 0 : index
    %c0_19 = arith.constant 0 : index
    %c0_20 = arith.constant 0 : index
    %c0_21 = arith.constant 0 : index
    %53 = vector.load %arg5[%c0_18, %c0_19, %c0_20, %c0_21] : memref<1x1x1x128xf32, #tpu.memory_space<vmem>>, vector<1x1x1x128xf32>
    tpu.vector_store %arg5[%c0_18, %c0_19, %c0_20, %c0_21], %52 {strides = array<i32>} : memref<1x1x1x128xf32, #tpu.memory_space<vmem>>, vector<1x1x1x128xf32>,
    return
  }
  func.func @transform_0(%arg0: i32, %arg1: i32) -> (i32, i32, i32) {
    %c0_i32 = arith.constant 0 : i32
    %c0_i32_0 = arith.constant 0 : i32
    return %arg0, %c0_i32, %arg1 : i32, i32, i32
  }
  func.func @transform_1(%arg0: i32, %arg1: i32) -> (i32, i32, i32) {
    %c0_i32 = arith.constant 0 : i32
    %c0_i32_0 = arith.constant 0 : i32
    return %arg0, %c0_i32, %arg1 : i32, i32, i32
  }
  func.func @transform_2(%arg0: i32, %arg1: i32) -> (i32, i32, i32) {
    %c0_i32 = arith.constant 0 : i32
    %c0_i32_0 = arith.constant 0 : i32
    %c0_i32_1 = arith.constant 0 : i32
    %c0_i32_2 = arith.constant 0 : i32
    return %c0_i32, %c0_i32_0, %c0_i32_1 : i32, i32, i32
  }
  func.func @transform_3(%arg0: i32, %arg1: i32) -> (i32, i32, i32, i32) {
    %c0_i32 = arith.constant 0 : i32
    %c0_i32_0 = arith.constant 0 : i32
    %c0_i32_1 = arith.constant 0 : i32
    return %arg0, %arg1, %c0_i32, %c0_i32_0 : i32, i32, i32, i32
  }
}

</mosaic_0001>

<llo_original>
// kernel: tpu_custom_call.1
$region0: #{tpu_custom_call.1}
  #allocation0 [shape = 'u32[]', space=smem, size = 0x4, offset = 0x4, fixed_abs, tag = 'smem constant byte address 0x4 - core index']
  #allocation1 [shape = 'u32[144,128]{1,0:T(1,128)}', space=vmem, size = 0x12000, scoped, tag = 'internal scratch']
  %s0 = inlined_call_operand.hbm [shape: f32[2,4,256], index: 0, kind: input, shape index: {}]
  %s1 = inlined_call_operand.vmem [shape: s32[2,1,256], index: 1, kind: input, shape index: {}]
  %s2 = inlined_call_operand.vmem [shape: f32[1,4,1], index: 2, kind: input, shape index: {}]
  %s3 = inlined_call_operand.hbm [shape: f32[1,1,1,128], index: 3, kind: output, shape index: {}]
  %s4 = sld [smem:[#allocation0]]
  $region26: #{tpu_custom_call.1} parent=0
    _
  %s6 = ssub.s32 1, %s4
  %s7 = scalar_select 0, %s6, %s4
  $region1: #{tpu_custom_call.1} parent=0
    #allocation2 [shape = 'u8[8192]{0}', space=vmem, size = 0x2000, scoped, tag = 'input window, operand 0, single buffered']
    #allocation3 [shape = 's32[1]{0}', space=sflag, size = 0x4, scoped, tag = 'scoped memory for tpu_custom_call.1']
    #allocation4 [shape = 's32[1]{0}', space=sflag, size = 0x4, scoped, tag = 'scoped memory for tpu_custom_call.1']
    #allocation5 [shape = 'u8[512]{0}', space=vmem, size = 0x400, scoped, tag = 'output window, operand 0, single buffered']
    %8 = vsyncpa [#allocation3], 0
    %9 = vsyncpa [#allocation4], 0
    // Predicated region
    $region2: #{tpu_custom_call.1} parent=1 // pred_check
      _
    $region3: #{tpu_custom_call.1} parent=1 // pred_check_branch
      %11 = sbr.rel (0) target = $region5
    $region4: #{tpu_custom_call.1} parent=1 // pred_region
      %s13 = ssub.s32 256, 256
      %14 = vsyncadd [#allocation3], %s13
      %s15 = sshll.u32 [#allocation2], 4
      %s16 = int_to_ptr.vmem [resolvable:$true] %s15
      %21 = dma.hbm_to_vmem [thread:$0]  %s0, 256, %s16, [#allocation3], 128, 128, 8
    $region5: #{tpu_custom_call.1} parent=1 // pred_fallthru
      _
    // Predicated region
    $region6: #{tpu_custom_call.1} parent=1 // pred_check
      _
    $region7: #{tpu_custom_call.1} parent=1 // pred_check_branch
      %23 = sbr.rel (0) target = $region9
    $region8: #{tpu_custom_call.1} parent=1 // pred_region
      _
    $region9: #{tpu_custom_call.1} parent=1 // pred_fallthru
      _
    // Predicated region
    $region10: #{tpu_custom_call.1} parent=1 // pred_check
      _
    $region11: #{tpu_custom_call.1} parent=1 // pred_check_branch
      %25 = sbr.rel (0) target = $region13
    $region12: #{tpu_custom_call.1} parent=1 // pred_region
      _
    $region13: #{tpu_custom_call.1} parent=1 // pred_fallthru
      _
    // Predicated region
    $region14: #{tpu_custom_call.1} parent=1 // pred_check
      _
    $region15: #{tpu_custom_call.1} parent=1 // pred_check_branch
      %27 = sbr.rel (0) target = $region17
    $region16: #{tpu_custom_call.1} parent=1 // pred_region
      %28 = dma.done [#allocation3], 256
    $region17: #{tpu_custom_call.1} parent=1 // pred_fallthru
      _
    %v29 = vld [vmem:[#allocation2] sm:$0xff]
    %v30 = vld [vmem:[#allocation2 + $0x8] sm:$0xff]
    %v33 = vcombine.high %v29, %v29
    %v34 = vcombine.high %v30, %v30
    %vm37 = vcmask 1043456
    %v38 = vsel %vm37, %v29, -inf
    %v39 = vrot.slane %v38, 4
    %v40 = vmax.f32 %v38, %v39
    %v41 = vrot.slane %v40, 2
    %v42 = vmax.f32 %v40, %v41
    %v43 = vrot.slane %v42, 1
    %v44 = vmax.f32 %v42, %v43
    %v45 = vsel %vm37, %v33, -inf
    %v46 = vrot.slane %v45, 4
    %v47 = vmax.f32 %v45, %v46
    %v48 = vrot.slane %v47, 2
    %v49 = vmax.f32 %v47, %v48
    %v50 = vrot.slane %v49, 1
    %v51 = vmax.f32 %v49, %v50
    %v52 = vsel %vm37, %v30, -inf
    %v53 = vrot.slane %v52, 4
    %v54 = vmax.f32 %v52, %v53
    %v55 = vrot.slane %v54, 2
    %v56 = vmax.f32 %v54, %v55
    %v57 = vrot.slane %v56, 1
    %v58 = vmax.f32 %v56, %v57
    %v59 = vsel %vm37, %v34, -inf
    %v60 = vrot.slane %v59, 4
    %v61 = vmax.f32 %v59, %v60
    %v62 = vrot.slane %v61, 2
    %v63 = vmax.f32 %v61, %v62
    %v64 = vrot.slane %v63, 1
    %v65 = vmax.f32 %v63, %v64
    %v70 = vcombine.low %v44, %v51
    %v71 = vcombine.low %v58, %v65
    %v74 = vsub.f32 %v29, %v70
    %v75 = vsub.f32 %v30, %v71
    %v76 = vmul.f32 %v74, 1.442695
    %v77 = vpow.pop %v76
    %v78 = vmul.f32 %v75, 1.442695
    %v79 = vpow.pop %v78
    %v80 = vld [vmem:[%s1] sm:$0x3]
    %v81 = vld [vmem:[%s1 + $0x2] sm:$0x3]
    %v82 = vlaneseq
    %v83 = vshrl.u32 %v82, 7
    %v84 = vlaneseq
    %v85 = vshrl.u32 %v84, 7
    %v86 = vsub.s32 0, %v85
    %v87 = vrot.slane %v80, %v86
    %v88 = vlaneseq
    %v89 = vshrl.u32 %v88, 7
    %v90 = vsub.s32 1, %v89
    %v91 = vrot.slane %v80, %v90
    %v92 = vlaneseq
    %v93 = vshrl.u32 %v92, 7
    %v94 = vsub.s32 0, %v93
    %v95 = vrot.slane %v81, %v94
    %v96 = vlaneseq
    %v97 = vshrl.u32 %v96, 7
    %v98 = vsub.s32 1, %v97
    %v99 = vrot.slane %v81, %v98
    %vm100 = vcmp.eq.s32.totalorder %v83, %v87
    %vm101 = vcmp.eq.s32.totalorder %v83, %v91
    %vm102 = vcmp.eq.s32.totalorder %v83, %v95
    %vm103 = vcmp.eq.s32.totalorder %v83, %v99
    %v104 = vsel %vm100, 1, 0
    %v105 = vsel %vm101, 1, 0
    %v106 = vsel %vm102, 1, 0
    %v107 = vsel %vm103, 1, 0
    %v108 = vcvt.s32.f32 %v104
    %v109 = vcvt.s32.f32 %v105
    %v110 = vcvt.s32.f32 %v106
    %v111 = vcvt.s32.f32 %v107
    %v114 = vcombine.high %v77, %v77
    %v115 = vcombine.high %v79, %v79
    %v118 = vsel %vm37, %v77, 0.0
    %v119 = vrot.slane %v118, 4
    %v120 = vadd.f32 %v118, %v119
    %v121 = vrot.slane %v120, 2
    %v122 = vadd.f32 %v120, %v121
    %v123 = vrot.slane %v122, 1
    %v124 = vadd.f32 %v122, %v123
    %v125 = vsel %vm37, %v114, 0.0
    %v126 = vrot.slane %v125, 4
    %v127 = vadd.f32 %v125, %v126
    %v128 = vrot.slane %v127, 2
    %v129 = vadd.f32 %v127, %v128
    %v130 = vrot.slane %v129, 1
    %v131 = vadd.f32 %v129, %v130
    %v132 = vsel %vm37, %v79, 0.0
    %v133 = vrot.slane %v132, 4
    %v134 = vadd.f32 %v132, %v133
    %v135 = vrot.slane %v134, 2
    %v136 = vadd.f32 %v134, %v135
    %v137 = vrot.slane %v136, 1
    %v138 = vadd.f32 %v136, %v137
    %v139 = vsel %vm37, %v115, 0.0
    %v140 = vrot.slane %v139, 4
    %v141 = vadd.f32 %v139, %v140
    %v142 = vrot.slane %v141, 2
    %v143 = vadd.f32 %v141, %v142
    %v144 = vrot.slane %v143, 1
    %v145 = vadd.f32 %v143, %v144
    %v150 = vcombine.low %v108, %v109
    %v151 = vcombine.low %v110, %v111
    %v154 = vmul.f32 %v77, %v150
    %v155 = vmul.f32 %v79, %v151
    %v158 = vcombine.high %v154, %v154
    %v159 = vcombine.high %v155, %v155
    %v162 = vsel %vm37, %v154, 0.0
    %v163 = vrot.slane %v162, 4
    %v164 = vadd.f32 %v162, %v163
    %v165 = vrot.slane %v164, 2
    %v166 = vadd.f32 %v164, %v165
    %v167 = vrot.slane %v166, 1
    %v168 = vadd.f32 %v166, %v167
    %v169 = vsel %vm37, %v158, 0.0
    %v170 = vrot.slane %v169, 4
    %v171 = vadd.f32 %v169, %v170
    %v172 = vrot.slane %v171, 2
    %v173 = vadd.f32 %v171, %v172
    %v174 = vrot.slane %v173, 1
    %v175 = vadd.f32 %v173, %v174
    %v176 = vsel %vm37, %v155, 0.0
    %v177 = vrot.slane %v176, 4
    %v178 = vadd.f32 %v176, %v177
    %v179 = vrot.slane %v178, 2
    %v180 = vadd.f32 %v178, %v179
    %v181 = vrot.slane %v180, 1
    %v182 = vadd.f32 %v180, %v181
    %v183 = vsel %vm37, %v159, 0.0
    %v184 = vrot.slane %v183, 4
    %v185 = vadd.f32 %v183, %v184
    %v186 = vrot.slane %v185, 2
    %v187 = vadd.f32 %v185, %v186
    %v188 = vrot.slane %v187, 1
    %v189 = vadd.f32 %v187, %v188
    %v190 = vrcp.pop %v124
    %v191 = vmul.f32 %v168, %v190
    %v192 = vrcp.pop %v131
    %v193 = vmul.f32 %v175, %v192
    %v194 = vrcp.pop %v138
    %v195 = vmul.f32 %v182, %v194
    %v196 = vrcp.pop %v145
    %v197 = vmul.f32 %v189, %v196
    %v198 = vadd.f32 %v191, 0.0001
    %v199 = vadd.f32 %v193, 0.0001
    %v200 = vadd.f32 %v195, 0.0001
    %v201 = vadd.f32 %v197, 0.0001
    %v202 = vld [vmem:[%s2] sm:$0xf]
    %204 = vset.pattern.permute.xlu0 0
    %205 = vperm.xlu0 %204, %v202
    %v206 = vpop.permute.xlu0 %205
    %v208 = vmul.f32 %v206, %v108
    %v209 = vmul.f32 %v206, %v109
    %v210 = vmul.f32 %v206, %v110
    %v211 = vmul.f32 %v206, %v111
    %v212 = vsel %vm37, %v208, 0.0
    %v213 = vrot.slane %v212, 4
    %v214 = vadd.f32 %v212, %v213
    %v215 = vrot.slane %v214, 2
    %v216 = vadd.f32 %v214, %v215
    %v217 = vrot.slane %v216, 1
    %v218 = vadd.f32 %v216, %v217
    %v219 = vsel %vm37, %v209, 0.0
    %v220 = vrot.slane %v219, 4
    %v221 = vadd.f32 %v219, %v220
    %v222 = vrot.slane %v221, 2
    %v223 = vadd.f32 %v221, %v222
    %v224 = vrot.slane %v223, 1
    %v225 = vadd.f32 %v223, %v224
    %v226 = vsel %vm37, %v210, 0.0
    %v227 = vrot.slane %v226, 4
    %v228 = vadd.f32 %v226, %v227
    %v229 = vrot.slane %v228, 2
    %v230 = vadd.f32 %v228, %v229
    %v231 = vrot.slane %v230, 1
    %v232 = vadd.f32 %v230, %v231
    %v233 = vsel %vm37, %v211, 0.0
    %v234 = vrot.slane %v233, 4
    %v235 = vadd.f32 %v233, %v234
    %v236 = vrot.slane %v235, 2
    %v237 = vadd.f32 %v235, %v236
    %v238 = vrot.slane %v237, 1
    %v239 = vadd.f32 %v237, %v238
    %v240 = vlog2.pop %v198
    %v241 = vmul.f32 %v240, 0.6931472
    %v242 = vlog2.pop %v199
    %v243 = vmul.f32 %v242, 0.6931472
    %v244 = vlog2.pop %v200
    %v245 = vmul.f32 %v244, 0.6931472
    %v246 = vlog2.pop %v201
    %v247 = vmul.f32 %v246, 0.6931472
    %v248 = vsub.f32 1.0, %v198
    %v249 = vsub.f32 1.0, %v199
    %v250 = vsub.f32 1.0, %v200
    %v251 = vsub.f32 1.0, %v201
    %v252 = vmul.f32 %v248, %v248
    %v253 = vmul.f32 %v249, %v249
    %v254 = vmul.f32 %v250, %v250
    %v255 = vmul.f32 %v251, %v251
    %v256 = vsub.f32 0.0, %v218
    %v257 = vsub.f32 0.0, %v225
    %v258 = vsub.f32 0.0, %v232
    %v259 = vsub.f32 0.0, %v239
    %v260 = vmul.f32 %v256, %v252
    %v261 = vmul.f32 %v257, %v253
    %v262 = vmul.f32 %v258, %v254
    %v263 = vmul.f32 %v259, %v255
    %v264 = vmul.f32 %v260, %v241
    %v265 = vmul.f32 %v261, %v243
    %v266 = vmul.f32 %v262, %v245
    %v267 = vmul.f32 %v263, %v247
    %s268 = smul.u32 0, 2
    %v269 = vstv %s268
    %v270 = vadd.s32 %v269, 1
    %s271 = smul.u32 0, 256
    %v272 = vlaneseq
    %v273 = vand.u32 %v272, 127
    %v274 = vadd.s32 %v273, 128
    %v275 = vstv %s271
    %v276 = vadd.s32 %v275, %v273
    %v277 = vadd.s32 %v275, %v274
    %vm278 = vcmp.lt.s32.totalorder %v269, 2
    %vm279 = vcmp.lt.s32.totalorder %v270, 2
    %vm280 = vcmp.lt.s32.totalorder %v276, 256
    %vm281 = vcmp.lt.s32.totalorder %v277, 256
    %vm282 = vmand %vm278, %vm280
    %vm283 = vmand %vm278, %vm281
    %vm284 = vmand %vm279, %vm280
    %vm285 = vmand %vm279, %vm281
    %v286 = vsel %vm282, %v264, 0.0
    %v287 = vsel %vm283, %v265, 0.0
    %v288 = vsel %vm284, %v266, 0.0
    %v289 = vsel %vm285, %v267, 0.0
    %vm290 = vcmask 1040384
    %v291 = vsel %vm290, %v286, 0.0
    %v292 = vsel %vm290, %v287, 0.0
    %v293 = vadd.f32 %v291, %v292
    %v294 = vsel %vm290, %v288, 0.0
    %v295 = vadd.f32 %v293, %v294
    %v296 = vsel %vm290, %v289, 0.0
    %v297 = vadd.f32 %v295, %v296
    %298 = vadd.xlane.f32.xlu0 %v297
    %v299 = vpop.xlane.xlu0 %298
    %v300 = vrot.slane %v299, 4
    %v301 = vadd.f32 %v299, %v300
    %v302 = vrot.slane %v301, 2
    %v303 = vadd.f32 %v301, %v302
    %v304 = vrot.slane %v303, 1
    %v305 = vadd.f32 %v303, %v304
    %s306 = vtos %v305
    %v307 = vstv %s306
    %308 = vst [vmem:[#allocation5] sm:$0x1] %v307
    // Predicated region
    $region18: #{tpu_custom_call.1} parent=1 // pred_check
      _
    $region19: #{tpu_custom_call.1} parent=1 // pred_check_branch
      %310 = sbr.rel (0) target = $region21
    $region20: #{tpu_custom_call.1} parent=1 // pred_region
      %s312 = ssub.s32 16, 16
      %313 = vsyncadd [#allocation4], %s312
      %s315 = sshll.u32 [#allocation5], 4
      %s316 = int_to_ptr.vmem [resolvable:$true] %s315
      %318 = dma.vmem_to_hbm [thread:$0]  %s316, 16, %s3, [#allocation4]
    $region21: #{tpu_custom_call.1} parent=1 // pred_fallthru
      _
    // Predicated region
    $region22: #{tpu_custom_call.1} parent=1 // pred_check
      _
    $region23: #{tpu_custom_call.1} parent=1 // pred_check_branch
      %320 = sbr.rel (0) target = $region25
    $region24: #{tpu_custom_call.1} parent=1 // pred_region
      %321 = dma.done [#allocation4], 16
    $region25: #{tpu_custom_call.1} parent=1 // pred_fallthru
      _
    %322 = vsyncpa [#allocation3], 1
    %323 = vsyncpa [#allocation4], 1

</llo_original>
